<compile_context>
chip_gen: v7x
topology: tpu7x:2x2x1
jax: 0.10.0
libtpu: 0.0.40
codegen_flags: <defaults>
</compile_context>

<pallas_src>
import functools
import math

import jax
import jax.numpy as jnp
from jax import lax
from jax.experimental import pallas as pl
from jax.experimental.pallas import tpu as pltpu


def _cdiv(a, b):
    return -(-a // b)


def _round_up(a, b):
    return _cdiv(a, b) * b


# ---------------------------------------------------------------------------
# Kernels
# ---------------------------------------------------------------------------
def _one_hot_folded_kernel(x_ref, sel_ref, cls_ref, o_ref, *, chunk_r, num_chunks):
    """out[r, g*K + c] = (x[r, g] == c), emitted lane-dense.

    x_ref:   (tile_r, group) int32
    sel_ref: (group, group*K) f32, sel[g, j] = (j // K == g)   (MXU "repeat" selector)
    cls_ref: (1, group*K) f32,     cls[j]    = j % K
    o_ref:   (tile_r, group*K) f32
    """

    def do_chunk(c):
        r0 = c * chunk_r
        if not isinstance(r0, int) and chunk_r % 8 == 0:
            r0 = pl.multiple_of(r0, 8)
        xc = x_ref[pl.ds(r0, chunk_r), :].astype(jnp.float32)
        # Lane-expand x on the idle MXU: xr[r, j] = x[r, j // K].
        # Exact: integer values < 2**24 and selector entries are 0/1.
        xr = jnp.dot(xc, sel_ref[...], preferred_element_type=jnp.float32)
        o_ref[pl.ds(r0, chunk_r), :] = (xr == cls_ref[...]).astype(jnp.float32)

    if num_chunks == 1:
        do_chunk(0)
    else:
        def body(c, carry):
            do_chunk(c)
            return carry
        lax.fori_loop(0, num_chunks, body, 0)


def _one_hot_direct_kernel(x_ref, o_ref, *, chunk_r, num_chunks, k):
    """out[r, c] = (x[r, 0] == c); output lane dim is K (already dense, or tiny n)."""
    cls = lax.broadcasted_iota(jnp.int32, (chunk_r, k), 1)   # hoisted once per block

    def do_chunk(c):
        r0 = c * chunk_r
        if not isinstance(r0, int) and chunk_r % 8 == 0:
            r0 = pl.multiple_of(r0, 8)
        xc = x_ref[pl.ds(r0, chunk_r), :]                    # (chunk_r, 1) int32
        o_ref[pl.ds(r0, chunk_r), :] = (xc == cls).astype(jnp.float32)

    if num_chunks == 1:
        do_chunk(0)
    else:
        def body(c, carry):
            do_chunk(c)
            return carry
        lax.fori_loop(0, num_chunks, body, 0)


# ---------------------------------------------------------------------------
# Tiling heuristics
# ---------------------------------------------------------------------------
def _choose_group(k, n):
    """Flattened elements folded per output row (1 => direct/unfolded path)."""
    if k % 128 == 0:
        return 1                                    # already lane-dense
    g0 = 128 // math.gcd(k, 128)                    # smallest g with (g*k) % 128 == 0
    max_lanes = 8192
    cands = [g for g in range(g0, max_lanes // k + 1, g0) if _cdiv(n, g) >= 8]
    if not cands:
        return 1                                    # tiny n or huge odd k
    divs = [g for g in cands if n % g == 0]         # exact fold -> no trailing output copy
    if k >= 128 and not divs:
        # Unfolded is already >= 50% lane occupancy; folding would force a full
        # output slice copy which costs more than the masked store tail.
        return 1
    pool = divs if divs else cands
    wide = [g for g in pool if g * k >= 512]        # >=512 lanes keeps x-tile overhead small
    return wide[0] if wide else pool[-1]


def _choose_tiles(rows, row_bytes, target_block_bytes, chunk_bytes):
    """-> (tile_r, chunk_r, num_blocks, num_chunks); tile_r == num_chunks * chunk_r."""
    chunk_r = max(8, (chunk_bytes // row_bytes) // 8 * 8)
    if rows <= chunk_r:
        return rows, rows, 1, 1
    max_tile_r = (rows // chunk_r) * chunk_r
    tile_r = min(max_tile_r,
                 max(chunk_r, (target_block_bytes // (row_bytes * chunk_r)) * chunk_r))
    nb = _cdiv(rows, tile_r)
    if nb < 4 and rows >= 4 * chunk_r:              # v7x: 2 TCs x >= 2 pipelined steps each
        tile_r = min(max_tile_r, max(chunk_r, _round_up(_cdiv(rows, 4), chunk_r)))
        nb = _cdiv(rows, tile_r)
    if nb > 1 and nb % 2 == 1:                      # avoid a 2:1 block imbalance across 2 TCs
        t2 = min(max_tile_r, max(chunk_r, _round_up(_cdiv(rows, nb + 1), chunk_r)))
        if _cdiv(rows, t2) % 2 == 0:
            tile_r = t2
    return tile_r, chunk_r, _cdiv(rows, tile_r), tile_r // chunk_r


# ---------------------------------------------------------------------------
# Wrapper
# ---------------------------------------------------------------------------
def one_hot_encoding(x, num_categories, *, target_block_bytes=8 * 1024 * 1024,
                     chunk_bytes=512 * 1024):
    """Pallas equivalent of OneHotEncoding(num_categories)(x) -> float32."""
    k = int(num_categories)
    orig_shape = tuple(x.shape)
    n = int(math.prod(orig_shape))
    if n == 0:
        return jnp.zeros((*orig_shape, k), jnp.float32)

    x_flat = x.reshape(-1).astype(jnp.int32)

    group = _choose_group(k, n)
    lanes = group * k
    rows = _cdiv(n, group)
    pad = rows * group - n
    row_bytes = 4 * lanes

    tile_r, chunk_r, num_blocks, num_chunks = _choose_tiles(
        rows, row_bytes, target_block_bytes, chunk_bytes)

    if group > 1:
        if pad:
            x_flat = jnp.pad(x_flat, (0, pad))      # pad rows are sliced off below
        x_in = x_flat.reshape(rows, group)
        j = jnp.arange(lanes, dtype=jnp.int32)
        # Tiny constants kept as inputs (avoids in-kernel vector int div/mod);
        # their block index is constant so they are DMA'd once and revisited.
        sel = (j // k == jnp.arange(group, dtype=jnp.int32)[:, None]).astype(jnp.float32)
        cls = (j % k).astype(jnp.float32).reshape(1, lanes)
        kernel = functools.partial(_one_hot_folded_kernel,
                                   chunk_r=chunk_r, num_chunks=num_chunks)
        in_specs = [
            pl.BlockSpec((tile_r, group), lambda i: (i, 0)),
            pl.BlockSpec((group, lanes), lambda i: (0, 0)),
            pl.BlockSpec((1, lanes), lambda i: (0, 0)),
        ]
        args = (x_in, sel, cls)
        flops = 2 * rows * group * lanes
        in_bytes = rows * group * 4 + (group + 1) * lanes * 4
    else:
        x_in = x_flat.reshape(rows, 1)              # rows == n; exact shape, no pad/slice
        kernel = functools.partial(_one_hot_direct_kernel,
                                   chunk_r=chunk_r, num_chunks=num_chunks, k=k)
        in_specs = [pl.BlockSpec((tile_r, 1), lambda i: (i, 0))]
        args = (x_in,)
        flops = rows * lanes
        in_bytes = rows * 4

    # VMEM budget: double-buffered out + in blocks, constants, chunk temporaries.
    out_block = tile_r * row_bytes
    in_block = tile_r * _round_up(group, 128) * 4   # int32 x tile, conservative lane pad
    const_block = (group + 1) * lanes * 4 if group > 1 else 0
    vmem_need = (2 * out_block + 2 * in_block + 2 * const_block
                 + 6 * chunk_r * row_bytes + (4 << 20))
    vmem_limit = int(min(max(vmem_need, 32 << 20), 48 << 20))

    out = pl.pallas_call(
        kernel,
        out_shape=jax.ShapeDtypeStruct((rows, lanes), jnp.float32),
        grid=(num_blocks,),
        in_specs=in_specs,
        out_specs=pl.BlockSpec((tile_r, lanes), lambda i: (i, 0)),
        compiler_params=pltpu.CompilerParams(
            dimension_semantics=("parallel",),
            vmem_limit_bytes=vmem_limit,
        ),
        cost_estimate=pl.CostEstimate(
            flops=int(flops), transcendentals=0,
            bytes_accessed=int(rows * row_bytes + in_bytes)),
    )(*args)

    if group > 1:
        out = out.reshape(rows * group, k)          # free bitcast
        if pad:
            out = out[:n]                           # only when no divisor fold existed
    return out.reshape(*orig_shape, k)


class OneHotEncoding:
    """Mirror of the PyTorch module."""

    def __init__(self, num_categories):
        self.num_categories = num_categories

    def __call__(self, x):
        return one_hot_encoding(x, self.num_categories)


# ---------------------------------------------------------------------------
# Demo / checks
# ---------------------------------------------------------------------------
def _check(x, k):
    y = jax.block_until_ready(one_hot_encoding(x, k))
    y_ref = jax.nn.one_hot(x, k, dtype=jnp.float32)
    assert y.shape == (*x.shape, k) and y.dtype == jnp.float32
    assert jnp.array_equal(y, y_ref), (x.shape, k)


if __name__ == "__main__":
    key = jax.random.PRNGKey(0)

    # Primary: module-like small shape (batch=2, seq=8), num_categories=32.
    enc = OneHotEncoding(32)
    x = jax.random.randint(key, (2, 8), 0, 32, dtype=jnp.int32)
    y = jax.block_until_ready(enc(x))
    assert y.shape == (2, 8, 32) and y.dtype == jnp.float32
    assert jnp.array_equal(y, jax.nn.one_hot(x, 32, dtype=jnp.float32))

    # Folded (in-kernel MXU expansion) path, exact fold (no pad), 2 in-kernel chunks.
    _check(jax.random.randint(jax.random.fold_in(key, 1), (64, 128), 0, 32, jnp.int32), 32)
    # Folded path, multi-block "parallel" grid (4 steps).
    _check(jax.random.randint(jax.random.fold_in(key, 2), (128, 128), 0, 32, jnp.int32), 32)
    # Folded path with ragged N (no divisor group -> pad + trailing slice).
    _check(jax.random.randint(jax.random.fold_in(key, 3), (7, 13), 0, 32, jnp.int32), 32)
    # K >= 128, not a multiple of 128, N divisible by the fold factor.
    _check(jax.random.randint(jax.random.fold_in(key, 4), (16, 16), 0, 200, jnp.int32), 200)
    # Tiny ragged input with small odd K -> direct path.
    _check(jax.random.randint(jax.random.fold_in(key, 5), (5, 3), 0, 7, jnp.int32), 7)
    # K a multiple of 128 -> direct lane-dense path with exact (N, K) output.
    _check(jax.random.randint(jax.random.fold_in(key, 6), (3, 5), 0, 256, jnp.int32), 256)

    print("KERNEL_OK")
</pallas_src>

<mosaic_0001>
module attributes {stable_mosaic.version = 11 : i64} {
  func.func @_one_hot_direct_kernel(%arg0: i32, %arg1: memref<16x1xi32, #tpu.memory_space<vmem>>, %arg2: memref<16x32xf32, #tpu.memory_space<vmem>>) attributes {dimension_semantics = [#tpu.dimension_semantics<parallel>], iteration_bounds = array<i64: 1>, scalar_prefetch = 0 : i64, scratch_operands = 0 : i64, tpu.core_type = #tpu.core_type<tc>, window_params = [{transform_indices = @transform_0, window_bounds = array<i64: 16, 1>}, {transform_indices = @transform_1, window_bounds = array<i64: 16, 32>}]} {
    %0 = tpu.iota {dimensions = array<i32: 1>} : vector<16x32xi32>
    %c0 = arith.constant 0 : index
    %c0_0 = arith.constant 0 : index
    %1 = vector.load %arg1[%c0, %c0_0] : memref<16x1xi32, #tpu.memory_space<vmem>>, vector<16x1xi32>
    %2 = vector.broadcast %1 : vector<16x1xi32> to vector<16x32xi32>
    %3 = arith.cmpi eq, %2, %0 : vector<16x32xi32>
    %4 = arith.extui %3 : vector<16x32xi1> to vector<16x32xi32>
    %5 = arith.sitofp %4 : vector<16x32xi32> to vector<16x32xf32>
    %c0_1 = arith.constant 0 : index
    %c0_2 = arith.constant 0 : index
    %6 = vector.load %arg2[%c0_1, %c0_2] : memref<16x32xf32, #tpu.memory_space<vmem>>, vector<16x32xf32>
    tpu.vector_store %arg2[%c0_1, %c0_2], %5 {strides = array<i32>} : memref<16x32xf32, #tpu.memory_space<vmem>>, vector<16x32xf32>,
    return
  }
  func.func @transform_0(%arg0: i32) -> (i32, i32) {
    %c0_i32 = arith.constant 0 : i32
    %c0_i32_0 = arith.constant 0 : i32
    return %arg0, %c0_i32 : i32, i32
  }
  func.func @transform_1(%arg0: i32) -> (i32, i32) {
    %c0_i32 = arith.constant 0 : i32
    %c0_i32_0 = arith.constant 0 : i32
    return %arg0, %c0_i32 : i32, i32
  }
}

</mosaic_0001>

<llo_original>
// kernel: tpu_custom_call.1
$region0: #{tpu_custom_call.1}
  #allocation0 [shape = 'u32[]', space=smem, size = 0x4, offset = 0x4, fixed_abs, tag = 'smem constant byte address 0x4 - core index']
  #allocation1 [shape = 'u32[144,128]{1,0:T(1,128)}', space=vmem, size = 0x12000, scoped, tag = 'internal scratch']
  %s0 = inlined_call_operand.vmem [shape: s32[16,1], index: 0, kind: input, shape index: {}]
  %s1 = inlined_call_operand.hbm [shape: f32[16,32], index: 1, kind: output, shape index: {}]
  %s2 = sld [smem:[#allocation0]]
  $region14: #{tpu_custom_call.1} parent=0
    _
  %s4 = ssub.s32 1, %s2
  %s5 = scalar_select 0, %s4, %s2
  $region1: #{tpu_custom_call.1} parent=0
    #allocation2 [shape = 'u8[8192]{0}', space=vmem, size = 0x2000, scoped, tag = 'output window, operand 0, single buffered']
    #allocation3 [shape = 's32[1]{0}', space=sflag, size = 0x4, scoped, tag = 'scoped memory for tpu_custom_call.1']
    %6 = vsyncpa [#allocation3], 0
    // Predicated region
    $region2: #{tpu_custom_call.1} parent=1 // pred_check
      _
    $region3: #{tpu_custom_call.1} parent=1 // pred_check_branch
      %8 = sbr.rel (0) target = $region5
    $region4: #{tpu_custom_call.1} parent=1 // pred_region
      _
    $region5: #{tpu_custom_call.1} parent=1 // pred_fallthru
      _
    %v9 = vlaneseq
    %v10 = vand.u32 %v9, 127
    %v11 = vld [vmem:[%s0] sm:$0xff]
    %v12 = vld [vmem:[%s0 + $0x8] sm:$0xff]
    %13 = vset.pattern.permute.xlu0 0
    %14 = vperm.xlu0 %13, %v11
    %v15 = vpop.permute.xlu0 %14
    %16 = vset.pattern.permute.xlu0 0
    %17 = vperm.xlu0 %16, %v12
    %v18 = vpop.permute.xlu0 %17
    %vm19 = vcmp.eq.s32.totalorder %v15, %v10
    %vm20 = vcmp.eq.s32.totalorder %v18, %v10
    %v21 = vsel %vm19, 1, 0
    %v22 = vsel %vm20, 1, 0
    %v23 = vcvt.s32.f32 %v21
    %v24 = vcvt.s32.f32 %v22
    %vm25 = vcmask 261120
    %26 = vst.msk [vmem:[#allocation2] sm:$0xff] %vm25, %v23
    %27 = vst.msk [vmem:[#allocation2 + $0x8] sm:$0xff] %vm25, %v24
    // Predicated region
    $region6: #{tpu_custom_call.1} parent=1 // pred_check
      _
    $region7: #{tpu_custom_call.1} parent=1 // pred_check_branch
      %29 = sbr.rel (0) target = $region9
    $region8: #{tpu_custom_call.1} parent=1 // pred_region
      %s31 = ssub.s32 256, 256
      %32 = vsyncadd [#allocation3], %s31
      %s33 = sshll.u32 [#allocation2], 4
      %s34 = int_to_ptr.vmem [resolvable:$true] %s33
      %39 = dma.vmem_to_hbm [thread:$0]  %s34, 256, %s1, [#allocation3], 128, 128, 8
    $region9: #{tpu_custom_call.1} parent=1 // pred_fallthru
      _
    // Predicated region
    $region10: #{tpu_custom_call.1} parent=1 // pred_check
      _
    $region11: #{tpu_custom_call.1} parent=1 // pred_check_branch
      %41 = sbr.rel (0) target = $region13
    $region12: #{tpu_custom_call.1} parent=1 // pred_region
      %42 = dma.done [#allocation3], 256
    $region13: #{tpu_custom_call.1} parent=1 // pred_fallthru
      _
    %43 = vsyncpa [#allocation3], 1

</llo_original>
